<compile_context>
chip_gen: v6e
topology: v6e:2x2x1
jax: 0.10.0
libtpu: 0.0.40
codegen_flags: <defaults>
</compile_context>

<pallas_src>
import functools

import jax
import jax.numpy as jnp
import numpy as np
from jax.experimental import pallas as pl
from jax.experimental.pallas import tpu as pltpu

_LANE = 128


def _drop_path_kernel(x_ref, mask_ref, o_ref):
    # x_ref:    (TB, TF) input activations tile
    # mask_ref: (TB, 1)  per-sample keep mask, already scaled by 1/keep_prob
    # o_ref:    (TB, TF) output tile
    o_ref[...] = x_ref[...] * mask_ref[...]  # (TB,1) broadcasts over lanes (VPU)


def _choose_tiles(batch, feat_pad, itemsize):
    """Pick (TB, TF) tile sizes: lane-dense, sublane-aligned, VMEM-safe."""
    # Sublane packing: 8 rows for 4-byte, 16 for 2-byte, 32 for 1-byte dtypes.
    sub = max(8, 32 // max(1, itemsize))
    # Batch tile: full batch when small (full-extent dim sidesteps the (8,128)
    # divisibility rule); otherwise a sublane-aligned tile.
    if batch <= 256:
        tb = batch
    else:
        tb = 256  # multiple of 8/16/32 -> valid for all supported dtypes
    del sub  # tb above already respects packing for the tiled case
    # Lane tile: multiple of 128, 512..2048 preferred, bounded so one block is
    # ~2 MiB (double-buffered in+out ~= 4x block < 16 MiB scoped VMEM on v5e).
    target_block_bytes = 2 << 20
    tf_budget = (target_block_bytes // max(1, tb * itemsize)) // _LANE * _LANE
    tf_budget = max(_LANE, tf_budget)
    tf = min(feat_pad, 2048, tf_budget)
    tf = max(tf, min(feat_pad, _LANE))
    return tb, tf


def drop_path(x, key, drop_prob: float = 0.0, scale_by_keep: bool = True,
              training: bool = True, donate_x: bool = False):
    """JAX/Pallas equivalent of DropPath.forward."""
    if drop_prob == 0.0 or not training:
        return x
    keep_prob = 1.0 - drop_prob

    batch = x.shape[0]
    feat = int(np.prod(x.shape[1:])) if x.ndim > 1 else 1
    x2 = x.reshape(batch, feat)

    # Per-sample Bernoulli(keep_prob) mask, pre-scaled by 1/keep_prob.
    # (Tiny (B,1) array -- scaling here is negligible and keeps the kernel a
    # single broadcasted multiply.)
    inv_keep = (1.0 / keep_prob) if (keep_prob > 0.0 and scale_by_keep) else 1.0
    mask = jax.random.bernoulli(key, p=keep_prob, shape=(batch, 1))
    mask = mask.astype(x.dtype) * jnp.asarray(inv_keep, dtype=x.dtype)

    # Pad the feature axis to a multiple of 128 only if needed so every block
    # is lane-dense (unmasked vector stores).
    feat_pad = ((feat + _LANE - 1) // _LANE) * _LANE
    if feat_pad != feat:
        x2 = jnp.pad(x2, ((0, 0), (0, feat_pad - feat)))

    itemsize = jnp.dtype(x.dtype).itemsize
    tb, tf = _choose_tiles(batch, feat_pad, itemsize)
    grid = (pl.cdiv(batch, tb), pl.cdiv(feat_pad, tf))

    out = pl.pallas_call(
        _drop_path_kernel,
        out_shape=jax.ShapeDtypeStruct((batch, feat_pad), x.dtype),
        grid=grid,
        in_specs=[
            pl.BlockSpec((tb, tf), lambda i, j: (i, j)),   # activations tile
            pl.BlockSpec((tb, 1), lambda i, j: (i, 0)),    # per-sample mask
        ],
        out_specs=pl.BlockSpec((tb, tf), lambda i, j: (i, j)),
        compiler_params=pltpu.CompilerParams(
            dimension_semantics=("parallel", "parallel")),
        # Elementwise op can run in place when the caller donates x.
        input_output_aliases=({0: 0} if (donate_x and feat_pad == feat) else {}),
    )(x2, mask)

    if feat_pad != feat:
        out = out[:, :feat]
    # TODO(synk): for very small activations (or when a neighboring residual
    # add exists), fuse DropPath into that kernel instead of a standalone call.
    return out.reshape(x.shape)


if __name__ == "__main__":
    key = jax.random.PRNGKey(0)
    k_x, k_mask = jax.random.split(key)

    # Small NCHW input consistent with a residual-block feature map.
    B, C, H, W = 2, 4, 16, 16
    x = jax.random.normal(k_x, (B, C, H, W), dtype=jnp.float32)

    drop_prob = 0.25
    y = drop_path(x, k_mask, drop_prob=drop_prob, scale_by_keep=True,
                  training=True)
    y = jax.block_until_ready(y)

    # Reference check (pure JAX, same mask / same semantics).
    keep_prob = 1.0 - drop_prob
    mask_ref = jax.random.bernoulli(k_mask, p=keep_prob, shape=(B, 1)).astype(x.dtype)
    mask_ref = mask_ref / keep_prob
    y_ref = x * mask_ref.reshape(B, 1, 1, 1)
    np.testing.assert_allclose(np.asarray(y), np.asarray(y_ref), rtol=1e-6, atol=1e-6)

    # Eval / drop_prob=0 paths must be identity.
    y_eval = drop_path(x, k_mask, drop_prob=drop_prob, training=False)
    np.testing.assert_allclose(np.asarray(y_eval), np.asarray(x))
    y_p0 = drop_path(x, k_mask, drop_prob=0.0, training=True)
    np.testing.assert_allclose(np.asarray(y_p0), np.asarray(x))

    print("KERNEL_OK")
</pallas_src>

<mosaic_0001>
module attributes {stable_mosaic.version = 11 : i64} {
  func.func @_drop_path_kernel(%arg0: i32, %arg1: i32, %arg2: memref<2x1024xf32, #tpu.memory_space<vmem>>, %arg3: memref<2x1xf32, #tpu.memory_space<vmem>>, %arg4: memref<2x1024xf32, #tpu.memory_space<vmem>>) attributes {dimension_semantics = [#tpu.dimension_semantics<parallel>, #tpu.dimension_semantics<parallel>], iteration_bounds = array<i64: 1, 1>, scalar_prefetch = 0 : i64, scratch_operands = 0 : i64, tpu.core_type = #tpu.core_type<tc>, window_params = [{transform_indices = @transform_0, window_bounds = array<i64: 2, 1024>}, {transform_indices = @transform_1, window_bounds = array<i64: 2, 1>}, {transform_indices = @transform_2, window_bounds = array<i64: 2, 1024>}]} {
    %c0 = arith.constant 0 : index
    %c0_0 = arith.constant 0 : index
    %0 = vector.load %arg2[%c0, %c0_0] : memref<2x1024xf32, #tpu.memory_space<vmem>>, vector<2x1024xf32>
    %c0_1 = arith.constant 0 : index
    %c0_2 = arith.constant 0 : index
    %1 = vector.load %arg3[%c0_1, %c0_2] : memref<2x1xf32, #tpu.memory_space<vmem>>, vector<2x1xf32>
    %2 = vector.broadcast %1 : vector<2x1xf32> to vector<2x1024xf32>
    %3 = arith.mulf %0, %2 : vector<2x1024xf32>
    %c0_3 = arith.constant 0 : index
    %c0_4 = arith.constant 0 : index
    %4 = vector.load %arg4[%c0_3, %c0_4] : memref<2x1024xf32, #tpu.memory_space<vmem>>, vector<2x1024xf32>
    tpu.vector_store %arg4[%c0_3, %c0_4], %3 {strides = array<i32>} : memref<2x1024xf32, #tpu.memory_space<vmem>>, vector<2x1024xf32>,
    return
  }
  func.func @transform_0(%arg0: i32, %arg1: i32) -> (i32, i32) {
    %c0_i32 = arith.constant 0 : i32
    return %arg0, %arg1 : i32, i32
  }
  func.func @transform_1(%arg0: i32, %arg1: i32) -> (i32, i32) {
    %c0_i32 = arith.constant 0 : i32
    %c0_i32_0 = arith.constant 0 : i32
    return %arg0, %c0_i32 : i32, i32
  }
  func.func @transform_2(%arg0: i32, %arg1: i32) -> (i32, i32) {
    %c0_i32 = arith.constant 0 : i32
    return %arg0, %arg1 : i32, i32
  }
}

</mosaic_0001>

<llo_original>
// kernel: tpu_custom_call.1
$region0: #{tpu_custom_call.1}
  #allocation0 [shape = 'u32[]', space=smem, size = 0x4, offset = 0x4, fixed_abs, tag = 'smem constant byte address 0x4 - core index']
  #allocation1 [shape = 'u32[144,128]{1,0:T(1,128)}', space=vmem, size = 0x12000, scoped, tag = 'internal scratch']
  %s0 = inlined_call_operand.hbm [shape: f32[2,1024], index: 0, kind: input, shape index: {}]
  %s1 = inlined_call_operand.vmem [shape: f32[2,1], index: 1, kind: input, shape index: {}]
  %s2 = inlined_call_operand.hbm [shape: f32[2,1024], index: 2, kind: output, shape index: {}]
  %s3 = sld [smem:[#allocation0]]
  $region22: #{tpu_custom_call.1} parent=0
    _
  %s5 = ssub.s32 1, %s3
  %s6 = scalar_select 0, %s5, %s3
  $region1: #{tpu_custom_call.1} parent=0
    #allocation2 [shape = 'u8[8192]{0}', space=vmem, size = 0x2000, scoped, tag = 'input window, operand 0, single buffered']
    #allocation3 [shape = 's32[1]{0}', space=sflag, size = 0x4, scoped, tag = 'scoped memory for tpu_custom_call.1']
    #allocation4 [shape = 's32[1]{0}', space=sflag, size = 0x4, scoped, tag = 'scoped memory for tpu_custom_call.1']
    #allocation5 [shape = 'u8[8192]{0}', space=vmem, size = 0x2000, scoped, tag = 'output window, operand 0, single buffered']
    %7 = vsyncpa [#allocation3], 0
    %8 = vsyncpa [#allocation4], 0
    // Predicated region
    $region2: #{tpu_custom_call.1} parent=1 // pred_check
      _
    $region3: #{tpu_custom_call.1} parent=1 // pred_check_branch
      %10 = sbr.rel (0) target = $region5
    $region4: #{tpu_custom_call.1} parent=1 // pred_region
      %s12 = ssub.s32 256, 256
      %13 = vsyncadd [#allocation3], %s12
      %s15 = sshll.u32 [#allocation2], 4
      %s16 = int_to_ptr.vmem [resolvable:$true] %s15
      %18 = dma.hbm_to_vmem [thread:$0]  %s0, 256, %s16, [#allocation3]
    $region5: #{tpu_custom_call.1} parent=1 // pred_fallthru
      _
    // Predicated region
    $region6: #{tpu_custom_call.1} parent=1 // pred_check
      _
    $region7: #{tpu_custom_call.1} parent=1 // pred_check_branch
      %20 = sbr.rel (0) target = $region9
    $region8: #{tpu_custom_call.1} parent=1 // pred_region
      _
    $region9: #{tpu_custom_call.1} parent=1 // pred_fallthru
      _
    // Predicated region
    $region10: #{tpu_custom_call.1} parent=1 // pred_check
      _
    $region11: #{tpu_custom_call.1} parent=1 // pred_check_branch
      %22 = sbr.rel (0) target = $region13
    $region12: #{tpu_custom_call.1} parent=1 // pred_region
      %23 = dma.done [#allocation3], 256
    $region13: #{tpu_custom_call.1} parent=1 // pred_fallthru
      _
    %v24 = vld [vmem:[#allocation2] sm:$0xff]
    %v25 = vld [vmem:[#allocation2 + $0x8] sm:$0xff]
    %v26 = vld [vmem:[%s1] sm:$0x3]
    %28 = vset.pattern.permute.xlu0 0
    %29 = vperm.xlu0 %28, %v26
    %v30 = vpop.permute.xlu0 %29
    %v32 = vunpack.c.l.s4 269488144
    %v33 = vunpack.c.0.s8 %v32
    %v34 = vlaneseq
    %v35 = vshrl.u32 %v34, 7
    %v36 = vsub.s32 %v33, %v35
    %v37 = vrot.slane %v30, %v36
    %v39 = vmul.f32 %v24, %v37
    %v40 = vmul.f32 %v25, %v37
    %41 = vst [vmem:[#allocation5] sm:$0xff] %v39
    %42 = vst [vmem:[#allocation5 + $0x8] sm:$0xff] %v40
    // Predicated region
    $region14: #{tpu_custom_call.1} parent=1 // pred_check
      _
    $region15: #{tpu_custom_call.1} parent=1 // pred_check_branch
      %44 = sbr.rel (0) target = $region17
    $region16: #{tpu_custom_call.1} parent=1 // pred_region
      %s46 = ssub.s32 256, 256
      %47 = vsyncadd [#allocation4], %s46
      %s49 = sshll.u32 [#allocation5], 4
      %s50 = int_to_ptr.vmem [resolvable:$true] %s49
      %52 = dma.vmem_to_hbm [thread:$0]  %s50, 256, %s2, [#allocation4]
    $region17: #{tpu_custom_call.1} parent=1 // pred_fallthru
      _
    // Predicated region
    $region18: #{tpu_custom_call.1} parent=1 // pred_check
      _
    $region19: #{tpu_custom_call.1} parent=1 // pred_check_branch
      %54 = sbr.rel (0) target = $region21
    $region20: #{tpu_custom_call.1} parent=1 // pred_region
      %55 = dma.done [#allocation4], 256
    $region21: #{tpu_custom_call.1} parent=1 // pred_fallthru
      _
    %56 = vsyncpa [#allocation3], 1
    %57 = vsyncpa [#allocation4], 1

</llo_original>
